<compile_context>
chip_gen: v7x
topology: tpu7x:2x2x1
jax: 0.10.0
libtpu: 0.0.40
codegen_flags: <defaults>
</compile_context>

<pallas_src>
import jax
import jax.numpy as jnp
from jax.experimental import pallas as pl
from jax.experimental.pallas import tpu as pltpu

NEG_SLOPE = 0.2


def _leaky_relu(x):
    # leaky_relu(x, 0.2) == max(x, 0.2*x) for slope in (0, 1)
    return jnp.maximum(x, NEG_SLOPE * x)


def _round_up(x, m):
    return ((x + m - 1) // m) * m


# ---------------------------------------------------------------------------
# Fused kernel: VPU layer 1  ->  MXU layer 2  ->  VPU/XLU layer 3
# ---------------------------------------------------------------------------
def _mine_kernel(noise_ref, sample_ref, w1n_ref, w1s_ref, b1_ref,
                 w2_ref, b2_ref, w3t_ref, b3_ref, o_ref):
    # ---- layer 1: tiny-K (5) GEMM as broadcast FMAs on the VPU ----
    h = noise_ref[:, 0:1] * w1n_ref[0:1, :]
    for k in range(1, noise_ref.shape[1]):
        h = h + noise_ref[:, k:k + 1] * w1n_ref[k:k + 1, :]
    for k in range(sample_ref.shape[1]):
        h = h + sample_ref[:, k:k + 1] * w1s_ref[k:k + 1, :]
    h = _leaky_relu(h + b1_ref[...])

    # ---- layer 2: the only real MXU GEMM (H x H), f32 accumulation ----
    h = jnp.dot(h, w2_ref[...], preferred_element_type=jnp.float32)
    h = _leaky_relu(h + b2_ref[...])

    # ---- layer 3: per output column, VPU multiply + XLU lane reduction ----
    cols = []
    for j in range(w3t_ref.shape[0]):
        col = jnp.sum(h * w3t_ref[j:j + 1, :], axis=-1, keepdims=True)
        cols.append(col + b3_ref[:, j:j + 1])
    out = cols[0] if len(cols) == 1 else jnp.concatenate(cols, axis=-1)
    o_ref[...] = _leaky_relu(out).astype(o_ref.dtype)


def mine_forward(noise, sample, params, *, tile_m=2048):
    """noise: (B, noise_size), sample: (B, sample_size) -> (B, output_size)."""
    B, noise_size = noise.shape
    sample_size = sample.shape[1]
    H = params["w2"].shape[0]                      # hidden_size
    out_size = params["w3"].shape[1]               # output_size

    noise = noise.astype(jnp.float32)
    sample = sample.astype(jnp.float32)

    # ---- batch tiling: large tiles amortize per-step overhead; keep >= 2
    # grid steps when the batch allows (v7x megacore sharding). ----
    m8 = _round_up(B, 8)
    tm = _round_up(min(tile_m, m8), 8)
    if m8 // tm < 2 and m8 >= 16:
        tm = _round_up(pl.cdiv(m8, 2), 8)
    M_pad = _round_up(B, tm)

    if M_pad != B:
        pad = M_pad - B
        noise = jnp.pad(noise, ((0, pad), (0, 0)))
        sample = jnp.pad(sample, ((0, pad), (0, 0)))

    # ---- weights / biases (tiny, VMEM-resident via constant index_maps) ----
    w1n = params["w1_noise"].astype(jnp.float32)            # (noise_size, H)
    w1s = params["w1_sample"].astype(jnp.float32)           # (sample_size, H)
    b1 = params["fc1_bias"].reshape(1, H).astype(jnp.float32)
    w2 = params["w2"].astype(jnp.float32)                    # (H, H)
    b2 = params["b2"].reshape(1, H).astype(jnp.float32)
    w3t = params["w3"].T.astype(jnp.float32)                 # (out_size, H)
    b3 = params["b3"].reshape(1, out_size).astype(jnp.float32)

    grid = (M_pad // tm,)
    K = noise_size + sample_size
    flops = 2 * M_pad * (K * H + H * H + H * out_size)
    bytes_accessed = 4 * (M_pad * (K + out_size) + K * H + 2 * H + H * H
                          + H * out_size + out_size)

    out = pl.pallas_call(
        _mine_kernel,
        out_shape=jax.ShapeDtypeStruct((M_pad, out_size), jnp.float32),
        grid=grid,
        in_specs=[
            pl.BlockSpec((tm, noise_size), lambda i: (i, 0)),   # noise tile
            pl.BlockSpec((tm, sample_size), lambda i: (i, 0)),  # sample tile
            pl.BlockSpec((noise_size, H), lambda i: (0, 0)),    # W1_noise
            pl.BlockSpec((sample_size, H), lambda i: (0, 0)),   # W1_sample
            pl.BlockSpec((1, H), lambda i: (0, 0)),             # b1
            pl.BlockSpec((H, H), lambda i: (0, 0)),             # W2
            pl.BlockSpec((1, H), lambda i: (0, 0)),             # b2
            pl.BlockSpec((out_size, H), lambda i: (0, 0)),      # W3^T
            pl.BlockSpec((1, out_size), lambda i: (0, 0)),      # b3
        ],
        out_specs=pl.BlockSpec((tm, out_size), lambda i: (i, 0)),
        compiler_params=pltpu.CompilerParams(
            dimension_semantics=("parallel",),
            vmem_limit_bytes=40 * 1024 * 1024),
        cost_estimate=pl.CostEstimate(
            flops=flops, transcendentals=0, bytes_accessed=bytes_accessed),
    )(noise, sample, w1n, w1s, b1, w2, b2, w3t, b3)

    return out if M_pad == B else out[:B]


# ---------------------------------------------------------------------------
# Pure-JAX reference for correctness checking
# ---------------------------------------------------------------------------
def reference_forward(noise, sample, p):
    x = noise @ p["w1_noise"] + sample @ p["w1_sample"] + p["fc1_bias"]
    x = jnp.where(x >= 0, x, NEG_SLOPE * x)
    x = x @ p["w2"] + p["b2"]
    x = jnp.where(x >= 0, x, NEG_SLOPE * x)
    x = x @ p["w3"] + p["b3"]
    x = jnp.where(x >= 0, x, NEG_SLOPE * x)
    return x


# ---------------------------------------------------------------------------
# Deterministic parameter init matching the PyTorch module
# (kaiming_normal_ on Linear weights, zero biases; weights stored as (in, out))
# ---------------------------------------------------------------------------
def init_params(key, noise_size=3, sample_size=2, output_size=1, hidden_size=128):
    keys = jax.random.split(key, 4)

    def kaiming_normal(k, fan_in, fan_out):
        std = (2.0 / fan_in) ** 0.5
        return std * jax.random.normal(k, (fan_in, fan_out), jnp.float32)

    p = {}
    p["w1_noise"] = kaiming_normal(keys[0], noise_size, hidden_size)
    p["w1_sample"] = kaiming_normal(keys[1], sample_size, hidden_size)
    p["fc1_bias"] = jnp.zeros((hidden_size,), jnp.float32)
    p["w2"] = kaiming_normal(keys[2], hidden_size, hidden_size)
    p["b2"] = jnp.zeros((hidden_size,), jnp.float32)
    p["w3"] = kaiming_normal(keys[3], hidden_size, output_size)
    p["b3"] = jnp.zeros((output_size,), jnp.float32)
    return p


if __name__ == "__main__":
    key = jax.random.PRNGKey(0)
    k_param, k_noise, k_sample = jax.random.split(key, 3)

    NOISE, SAMPLE, HIDDEN, OUT = 3, 2, 128, 1
    params = init_params(k_param, NOISE, SAMPLE, OUT, HIDDEN)
    ref = jax.jit(reference_forward)

    # Test 1: tiny batch (single grid step), default tile.
    B = 2
    noise = jax.random.normal(k_noise, (B, NOISE), jnp.float32)
    sample = jax.random.normal(k_sample, (B, SAMPLE), jnp.float32)
    y = jax.jit(mine_forward)(noise, sample, params)
    jax.block_until_ready(y)
    y_ref = ref(noise, sample, params)
    assert y.shape == (B, OUT)
    assert jnp.allclose(y, y_ref, rtol=1e-4, atol=1e-4), (y, y_ref)

    # Test 2: batch not a multiple of 8 and larger than the tile
    # (exercises multi-tile grid + padded-row path).
    B2 = 37
    noise2 = jax.random.normal(jax.random.PRNGKey(1), (B2, NOISE), jnp.float32)
    sample2 = jax.random.normal(jax.random.PRNGKey(2), (B2, SAMPLE), jnp.float32)
    y2 = jax.jit(lambda n, s, p: mine_forward(n, s, p, tile_m=16))(
        noise2, sample2, params)
    jax.block_until_ready(y2)
    y2_ref = ref(noise2, sample2, params)
    assert y2.shape == (B2, OUT)
    assert jnp.allclose(y2, y2_ref, rtol=1e-4, atol=1e-4)

    # TODO(synk): ma_et is optimizer-side state used in the MINE training loop,
    # not part of forward(); nothing to translate.
    print("KERNEL_OK")
</pallas_src>

<mosaic_0001>
module attributes {stable_mosaic.version = 11 : i64} {
  func.func @_mine_kernel(%arg0: i32, %arg1: memref<8x3xf32, #tpu.memory_space<vmem>>, %arg2: memref<8x2xf32, #tpu.memory_space<vmem>>, %arg3: memref<3x128xf32, #tpu.memory_space<vmem>>, %arg4: memref<2x128xf32, #tpu.memory_space<vmem>>, %arg5: memref<1x128xf32, #tpu.memory_space<vmem>>, %arg6: memref<128x128xf32, #tpu.memory_space<vmem>>, %arg7: memref<1x128xf32, #tpu.memory_space<vmem>>, %arg8: memref<1x128xf32, #tpu.memory_space<vmem>>, %arg9: memref<1x1xf32, #tpu.memory_space<vmem>>, %arg10: memref<8x1xf32, #tpu.memory_space<vmem>>) attributes {dimension_semantics = [#tpu.dimension_semantics<parallel>], iteration_bounds = array<i64: 1>, scalar_prefetch = 0 : i64, scratch_operands = 0 : i64, tpu.core_type = #tpu.core_type<tc>, window_params = [{transform_indices = @transform_0, window_bounds = array<i64: 8, 3>}, {transform_indices = @transform_1, window_bounds = array<i64: 8, 2>}, {pipeline_mode = #tpu.pipeline_mode<synchronous>, transform_indices = @transform_2, window_bounds = array<i64: 3, 128>}, {pipeline_mode = #tpu.pipeline_mode<synchronous>, transform_indices = @transform_3, window_bounds = array<i64: 2, 128>}, {pipeline_mode = #tpu.pipeline_mode<synchronous>, transform_indices = @transform_4, window_bounds = array<i64: 1, 128>}, {pipeline_mode = #tpu.pipeline_mode<synchronous>, transform_indices = @transform_5, window_bounds = array<i64: 128, 128>}, {pipeline_mode = #tpu.pipeline_mode<synchronous>, transform_indices = @transform_6, window_bounds = array<i64: 1, 128>}, {pipeline_mode = #tpu.pipeline_mode<synchronous>, transform_indices = @transform_7, window_bounds = array<i64: 1, 128>}, {pipeline_mode = #tpu.pipeline_mode<synchronous>, transform_indices = @transform_8, window_bounds = array<i64: 1, 1>}, {transform_indices = @transform_9, window_bounds = array<i64: 8, 1>}]} {
    %c0 = arith.constant 0 : index
    %c0_0 = arith.constant 0 : index
    %0 = vector.load %arg1[%c0, %c0_0] : memref<8x3xf32, #tpu.memory_space<vmem>>, vector<8x1xf32>
    %c0_1 = arith.constant 0 : index
    %c0_2 = arith.constant 0 : index
    %1 = vector.load %arg3[%c0_1, %c0_2] : memref<3x128xf32, #tpu.memory_space<vmem>>, vector<1x128xf32>
    %2 = vector.broadcast %0 : vector<8x1xf32> to vector<8x128xf32>
    %3 = vector.broadcast %1 : vector<1x128xf32> to vector<8x128xf32>
    %4 = arith.mulf %2, %3 : vector<8x128xf32>
    %c0_3 = arith.constant 0 : index
    %c1 = arith.constant 1 : index
    %5 = vector.load %arg1[%c0_3, %c1] : memref<8x3xf32, #tpu.memory_space<vmem>>, vector<8x1xf32>
    %c1_4 = arith.constant 1 : index
    %c0_5 = arith.constant 0 : index
    %6 = vector.load %arg3[%c1_4, %c0_5] : memref<3x128xf32, #tpu.memory_space<vmem>>, vector<1x128xf32>
    %7 = vector.broadcast %5 : vector<8x1xf32> to vector<8x128xf32>
    %8 = vector.broadcast %6 : vector<1x128xf32> to vector<8x128xf32>
    %9 = arith.mulf %7, %8 : vector<8x128xf32>
    %10 = arith.addf %4, %9 : vector<8x128xf32>
    %c0_6 = arith.constant 0 : index
    %c2 = arith.constant 2 : index
    %11 = vector.load %arg1[%c0_6, %c2] : memref<8x3xf32, #tpu.memory_space<vmem>>, vector<8x1xf32>
    %c2_7 = arith.constant 2 : index
    %c0_8 = arith.constant 0 : index
    %12 = vector.load %arg3[%c2_7, %c0_8] : memref<3x128xf32, #tpu.memory_space<vmem>>, vector<1x128xf32>
    %13 = vector.broadcast %11 : vector<8x1xf32> to vector<8x128xf32>
    %14 = vector.broadcast %12 : vector<1x128xf32> to vector<8x128xf32>
    %15 = arith.mulf %13, %14 : vector<8x128xf32>
    %16 = arith.addf %10, %15 : vector<8x128xf32>
    %c0_9 = arith.constant 0 : index
    %c0_10 = arith.constant 0 : index
    %17 = vector.load %arg2[%c0_9, %c0_10] : memref<8x2xf32, #tpu.memory_space<vmem>>, vector<8x1xf32>
    %c0_11 = arith.constant 0 : index
    %c0_12 = arith.constant 0 : index
    %18 = vector.load %arg4[%c0_11, %c0_12] : memref<2x128xf32, #tpu.memory_space<vmem>>, vector<1x128xf32>
    %19 = vector.broadcast %17 : vector<8x1xf32> to vector<8x128xf32>
    %20 = vector.broadcast %18 : vector<1x128xf32> to vector<8x128xf32>
    %21 = arith.mulf %19, %20 : vector<8x128xf32>
    %22 = arith.addf %16, %21 : vector<8x128xf32>
    %c0_13 = arith.constant 0 : index
    %c1_14 = arith.constant 1 : index
    %23 = vector.load %arg2[%c0_13, %c1_14] : memref<8x2xf32, #tpu.memory_space<vmem>>, vector<8x1xf32>
    %c1_15 = arith.constant 1 : index
    %c0_16 = arith.constant 0 : index
    %24 = vector.load %arg4[%c1_15, %c0_16] : memref<2x128xf32, #tpu.memory_space<vmem>>, vector<1x128xf32>
    %25 = vector.broadcast %23 : vector<8x1xf32> to vector<8x128xf32>
    %26 = vector.broadcast %24 : vector<1x128xf32> to vector<8x128xf32>
    %27 = arith.mulf %25, %26 : vector<8x128xf32>
    %28 = arith.addf %22, %27 : vector<8x128xf32>
    %c0_17 = arith.constant 0 : index
    %c0_18 = arith.constant 0 : index
    %29 = vector.load %arg5[%c0_17, %c0_18] : memref<1x128xf32, #tpu.memory_space<vmem>>, vector<1x128xf32>
    %30 = vector.broadcast %29 : vector<1x128xf32> to vector<8x128xf32>
    %31 = arith.addf %28, %30 : vector<8x128xf32>
    %cst = arith.constant 2.000000e-01 : f32
    %32 = vector.broadcast %cst : f32 to vector<8x128xf32>
    %33 = arith.mulf %32, %31 : vector<8x128xf32>
    %34 = arith.maximumf %31, %33 : vector<8x128xf32>
    %c0_19 = arith.constant 0 : index
    %c0_20 = arith.constant 0 : index
    %35 = vector.load %arg6[%c0_19, %c0_20] : memref<128x128xf32, #tpu.memory_space<vmem>>, vector<128x128xf32>
    %cst_21 = arith.constant dense<0.000000e+00> : vector<8x128xf32>
    %36 = tpu.matmul %34, %35, %cst_21 {dimension_numbers = #tpu.dot_dimension_numbers<[1], [0], [0], [1], [0, 0, 1, 1], [], []>} : vector<8x128xf32>, vector<128x128xf32>, vector<8x128xf32> -> vector<8x128xf32>
    %c0_22 = arith.constant 0 : index
    %c0_23 = arith.constant 0 : index
    %37 = vector.load %arg7[%c0_22, %c0_23] : memref<1x128xf32, #tpu.memory_space<vmem>>, vector<1x128xf32>
    %38 = vector.broadcast %37 : vector<1x128xf32> to vector<8x128xf32>
    %39 = arith.addf %36, %38 : vector<8x128xf32>
    %cst_24 = arith.constant 2.000000e-01 : f32
    %40 = vector.broadcast %cst_24 : f32 to vector<8x128xf32>
    %41 = arith.mulf %40, %39 : vector<8x128xf32>
    %42 = arith.maximumf %39, %41 : vector<8x128xf32>
    %c0_25 = arith.constant 0 : index
    %c0_26 = arith.constant 0 : index
    %43 = vector.load %arg8[%c0_25, %c0_26] : memref<1x128xf32, #tpu.memory_space<vmem>>, vector<1x128xf32>
    %44 = vector.broadcast %43 : vector<1x128xf32> to vector<8x128xf32>
    %45 = arith.mulf %42, %44 : vector<8x128xf32>
    %cst_27 = arith.constant dense<0.000000e+00> : vector<8xf32>
    %46 = vector.multi_reduction <add>, %45, %cst_27 [1] : vector<8x128xf32> to vector<8xf32>
    %47 = vector.shape_cast %46 : vector<8xf32> to vector<8x1xf32>
    %c0_28 = arith.constant 0 : index
    %c0_29 = arith.constant 0 : index
    %48 = vector.load %arg9[%c0_28, %c0_29] : memref<1x1xf32, #tpu.memory_space<vmem>>, vector<1x1xf32>
    %49 = vector.broadcast %48 : vector<1x1xf32> to vector<8x1xf32>
    %50 = arith.addf %47, %49 : vector<8x1xf32>
    %cst_30 = arith.constant 2.000000e-01 : f32
    %51 = vector.broadcast %cst_30 : f32 to vector<8x1xf32>
    %52 = arith.mulf %51, %50 : vector<8x1xf32>
    %53 = arith.maximumf %50, %52 : vector<8x1xf32>
    %c0_31 = arith.constant 0 : index
    %c0_32 = arith.constant 0 : index
    %54 = vector.load %arg10[%c0_31, %c0_32] : memref<8x1xf32, #tpu.memory_space<vmem>>, vector<8x1xf32>
    tpu.vector_store %arg10[%c0_31, %c0_32], %53 {strides = array<i32>} : memref<8x1xf32, #tpu.memory_space<vmem>>, vector<8x1xf32>,
    return
  }
  func.func @transform_0(%arg0: i32) -> (i32, i32) {
    %c0_i32 = arith.constant 0 : i32
    %c0_i32_0 = arith.constant 0 : i32
    return %arg0, %c0_i32 : i32, i32
  }
  func.func @transform_1(%arg0: i32) -> (i32, i32) {
    %c0_i32 = arith.constant 0 : i32
    %c0_i32_0 = arith.constant 0 : i32
    return %arg0, %c0_i32 : i32, i32
  }
  func.func @transform_2(%arg0: i32) -> (i32, i32) {
    %c0_i32 = arith.constant 0 : i32
    %c0_i32_0 = arith.constant 0 : i32
    %c0_i32_1 = arith.constant 0 : i32
    return %c0_i32, %c0_i32_0 : i32, i32
  }
  func.func @transform_3(%arg0: i32) -> (i32, i32) {
    %c0_i32 = arith.constant 0 : i32
    %c0_i32_0 = arith.constant 0 : i32
    %c0_i32_1 = arith.constant 0 : i32
    return %c0_i32, %c0_i32_0 : i32, i32
  }
  func.func @transform_4(%arg0: i32) -> (i32, i32) {
    %c0_i32 = arith.constant 0 : i32
    %c0_i32_0 = arith.constant 0 : i32
    %c0_i32_1 = arith.constant 0 : i32
    return %c0_i32, %c0_i32_0 : i32, i32
  }
  func.func @transform_5(%arg0: i32) -> (i32, i32) {
    %c0_i32 = arith.constant 0 : i32
    %c0_i32_0 = arith.constant 0 : i32
    %c0_i32_1 = arith.constant 0 : i32
    return %c0_i32, %c0_i32_0 : i32, i32
  }
  func.func @transform_6(%arg0: i32) -> (i32, i32) {
    %c0_i32 = arith.constant 0 : i32
    %c0_i32_0 = arith.constant 0 : i32
    %c0_i32_1 = arith.constant 0 : i32
    return %c0_i32, %c0_i32_0 : i32, i32
  }
  func.func @transform_7(%arg0: i32) -> (i32, i32) {
    %c0_i32 = arith.constant 0 : i32
    %c0_i32_0 = arith.constant 0 : i32
    %c0_i32_1 = arith.constant 0 : i32
    return %c0_i32, %c0_i32_0 : i32, i32
  }
  func.func @transform_8(%arg0: i32) -> (i32, i32) {
    %c0_i32 = arith.constant 0 : i32
    %c0_i32_0 = arith.constant 0 : i32
    %c0_i32_1 = arith.constant 0 : i32
    return %c0_i32, %c0_i32_0 : i32, i32
  }
  func.func @transform_9(%arg0: i32) -> (i32, i32) {
    %c0_i32 = arith.constant 0 : i32
    %c0_i32_0 = arith.constant 0 : i32
    return %arg0, %c0_i32 : i32, i32
  }
}

</mosaic_0001>

<llo_original>
// kernel: mine_forward.1
$region0: #{mine_forward.1}
  #allocation0 [shape = 'u32[]', space=smem, size = 0x4, offset = 0x4, fixed_abs, tag = 'smem constant byte address 0x4 - core index']
  #allocation1 [shape = 'u32[144,128]{1,0:T(1,128)}', space=vmem, size = 0x12000, scoped, tag = 'internal scratch']
  #allocation2 [shape = 'f32[1,1]{1,0:T(1,128)S(1)}', space=vmem, size = 0x200, scoped, tag = 'scoped memory for mine_forward.1']
  %s0 = inlined_call_operand.vmem [shape: f32[8,3], index: 0, kind: input, shape index: {}]
  %s1 = inlined_call_operand.vmem [shape: f32[8,2], index: 1, kind: input, shape index: {}]
  %s2 = inlined_call_operand.vmem [shape: f32[3,128], index: 2, kind: input, shape index: {}]
  %s3 = inlined_call_operand.vmem [shape: f32[2,128], index: 3, kind: input, shape index: {}]
  %s4 = inlined_call_operand.vmem [shape: f32[1,128], index: 4, kind: input, shape index: {}]
  %s5 = inlined_call_operand.hbm [shape: f32[128,128], index: 5, kind: input, shape index: {}]
  %s6 = inlined_call_operand.vmem [shape: f32[1,128], index: 6, kind: input, shape index: {}]
  %s7 = inlined_call_operand.vmem [shape: f32[1,128], index: 7, kind: input, shape index: {}]
  %s8 = inlined_call_operand.<no memory space> [shape: f32[1,1], index: 8, kind: input, shape index: {}]
  %s9 = inlined_call_operand.vmem [shape: f32[8,1], index: 9, kind: output, shape index: {}]
  %s10 = sld [smem:[#allocation0]]
  $region50: #{mine_forward.1} parent=0
    _
  %s12 = ssub.s32 1, %s10
  %s13 = scalar_select 0, %s12, %s10
  %v14 = vstv %s8
  %15 = vst [vmem:[#allocation2] sm:$0x1] %v14
  $region1: #{mine_forward.1} parent=0
    #allocation3 [shape = 'u8[65536]{0}', space=vmem, size = 0x10000, scoped, tag = 'input window, operand 5, single buffered']
    #allocation4 [shape = 's32[1]{0}', space=sflag, size = 0x4, scoped, tag = 'scoped memory for mine_forward.1']
    %16 = vsyncpa [#allocation4], 0
    // Predicated region
    $region2: #{mine_forward.1} parent=1 // pred_check
      _
    $region3: #{mine_forward.1} parent=1 // pred_check_branch
      %18 = sbr.rel (0) target = $region5
    $region4: #{mine_forward.1} parent=1 // pred_region
      _
    $region5: #{mine_forward.1} parent=1 // pred_fallthru
      _
    // Predicated region
    $region6: #{mine_forward.1} parent=1 // pred_check
      _
    $region7: #{mine_forward.1} parent=1 // pred_check_branch
      %20 = sbr.rel (0) target = $region9
    $region8: #{mine_forward.1} parent=1 // pred_region
      _
    $region9: #{mine_forward.1} parent=1 // pred_fallthru
      _
    // Predicated region
    $region10: #{mine_forward.1} parent=1 // pred_check
      _
    $region11: #{mine_forward.1} parent=1 // pred_check_branch
      %22 = sbr.rel (0) target = $region13
    $region12: #{mine_forward.1} parent=1 // pred_region
      _
    $region13: #{mine_forward.1} parent=1 // pred_fallthru
      _
    // Predicated region
    $region14: #{mine_forward.1} parent=1 // pred_check
      _
    $region15: #{mine_forward.1} parent=1 // pred_check_branch
      %24 = sbr.rel (0) target = $region17
    $region16: #{mine_forward.1} parent=1 // pred_region
      _
    $region17: #{mine_forward.1} parent=1 // pred_fallthru
      _
    // Predicated region
    $region18: #{mine_forward.1} parent=1 // pred_check
      _
    $region19: #{mine_forward.1} parent=1 // pred_check_branch
      %26 = sbr.rel (0) target = $region21
    $region20: #{mine_forward.1} parent=1 // pred_region
      _
    $region21: #{mine_forward.1} parent=1 // pred_fallthru
      _
    // Predicated region
    $region22: #{mine_forward.1} parent=1 // pred_check
      _
    $region23: #{mine_forward.1} parent=1 // pred_check_branch
      %28 = sbr.rel (0) target = $region25
    $region24: #{mine_forward.1} parent=1 // pred_region
      %s30 = ssub.s32 2048, 2048
      %31 = vsyncadd [#allocation4], %s30
      %s32 = sshll.u32 [#allocation3], 4
      %s33 = int_to_ptr.vmem [resolvable:$true] %s32
      %38 = dma.hbm_to_vmem [thread:$0]  %s5, 2048, %s33, [#allocation4], 128, 128, 8
    $region25: #{mine_forward.1} parent=1 // pred_fallthru
      _
    // Predicated region
    $region26: #{mine_forward.1} parent=1 // pred_check
      _
    $region27: #{mine_forward.1} parent=1 // pred_check_branch
      %40 = sbr.rel (0) target = $region29
    $region28: #{mine_forward.1} parent=1 // pred_region
      _
    $region29: #{mine_forward.1} parent=1 // pred_fallthru
      _
    // Predicated region
    $region30: #{mine_forward.1} parent=1 // pred_check
      _
    $region31: #{mine_forward.1} parent=1 // pred_check_branch
      %42 = sbr.rel (0) target = $region33
    $region32: #{mine_forward.1} parent=1 // pred_region
      _
    $region33: #{mine_forward.1} parent=1 // pred_fallthru
      _
    // Predicated region
    $region34: #{mine_forward.1} parent=1 // pred_check
      _
    $region35: #{mine_forward.1} parent=1 // pred_check_branch
      %44 = sbr.rel (0) target = $region37
    $region36: #{mine_forward.1} parent=1 // pred_region
      _
    $region37: #{mine_forward.1} parent=1 // pred_fallthru
      _
    // Predicated region
    $region38: #{mine_forward.1} parent=1 // pred_check
      _
    $region39: #{mine_forward.1} parent=1 // pred_check_branch
      %46 = sbr.rel (0) target = $region41
    $region40: #{mine_forward.1} parent=1 // pred_region
      %47 = dma.done [#allocation4], 2048
    $region41: #{mine_forward.1} parent=1 // pred_fallthru
      _
    %v48 = vld [vmem:[%s0] sm:$0xff]
    %v49 = vld [vmem:[%s2] sm:$0x1]
    %51 = vset.pattern.permute.xlu0 0
    %52 = vperm.xlu0 %51, %v48
    %v53 = vpop.permute.xlu0 %52
    %v55 = vlaneseq
    %v56 = vshrl.u32 %v55, 7
    %v57 = vsub.s32 0, %v56
    %v58 = vrot.slane %v49, %v57
    %v59 = vmul.f32 %v53, %v58
    %v60 = vld [vmem:[%s2 + $0x1] sm:$0x1]
    %61 = vset.pattern.permute.xlu0 1
    %62 = vperm.xlu0 %61, %v48
    %v63 = vpop.permute.xlu0 %62
    %v65 = vlaneseq
    %v66 = vshrl.u32 %v65, 7
    %v67 = vsub.s32 0, %v66
    %v68 = vrot.slane %v60, %v67
    %v69 = vmul.f32 %v63, %v68
    %v70 = vadd.f32 %v59, %v69
    %v71 = vld [vmem:[%s2 + $0x2] sm:$0x1]
    %72 = vset.pattern.permute.xlu0 2
    %73 = vperm.xlu0 %72, %v48
    %v74 = vpop.permute.xlu0 %73
    %v76 = vlaneseq
    %v77 = vshrl.u32 %v76, 7
    %v78 = vsub.s32 0, %v77
    %v79 = vrot.slane %v71, %v78
    %v80 = vmul.f32 %v74, %v79
    %v81 = vadd.f32 %v70, %v80
    %v82 = vld [vmem:[%s1] sm:$0xff]
    %v83 = vld [vmem:[%s3] sm:$0x1]
    %85 = vset.pattern.permute.xlu0 0
    %86 = vperm.xlu0 %85, %v82
    %v87 = vpop.permute.xlu0 %86
    %v89 = vlaneseq
    %v90 = vshrl.u32 %v89, 7
    %v91 = vsub.s32 0, %v90
    %v92 = vrot.slane %v83, %v91
    %v93 = vmul.f32 %v87, %v92
    %v94 = vadd.f32 %v81, %v93
    %v95 = vld [vmem:[%s3 + $0x1] sm:$0x1]
    %96 = vset.pattern.permute.xlu0 1
    %97 = vperm.xlu0 %96, %v82
    %v98 = vpop.permute.xlu0 %97
    %v100 = vlaneseq
    %v101 = vshrl.u32 %v100, 7
    %v102 = vsub.s32 0, %v101
    %v103 = vrot.slane %v95, %v102
    %v104 = vmul.f32 %v98, %v103
    %v105 = vadd.f32 %v94, %v104
    %v106 = vld [vmem:[%s4] sm:$0x1]
    %v108 = vlaneseq
    %v109 = vshrl.u32 %v108, 7
    %v110 = vsub.s32 0, %v109
    %v111 = vrot.slane %v106, %v110
    %v113 = vadd.f32 %v105, %v111
    %v114 = vmul.f32 %v113, 0.2
    %v115 = vmax.f32 %v113, %v114
    %v116 = vld [vmem:[#allocation3] sm:$0xff]
    %v117 = vld [vmem:[#allocation3 + $0x8] sm:$0xff]
    %v118 = vld [vmem:[#allocation3 + $0x10] sm:$0xff]
    %v119 = vld [vmem:[#allocation3 + $0x18] sm:$0xff]
    %v120 = vld [vmem:[#allocation3 + $0x20] sm:$0xff]
    %v121 = vld [vmem:[#allocation3 + $0x28] sm:$0xff]
    %v122 = vld [vmem:[#allocation3 + $0x30] sm:$0xff]
    %v123 = vld [vmem:[#allocation3 + $0x38] sm:$0xff]
    %v124 = vld [vmem:[#allocation3 + $0x40] sm:$0xff]
    %v125 = vld [vmem:[#allocation3 + $0x48] sm:$0xff]
    %v126 = vld [vmem:[#allocation3 + $0x50] sm:$0xff]
    %v127 = vld [vmem:[#allocation3 + $0x58] sm:$0xff]
    %v128 = vld [vmem:[#allocation3 + $0x60] sm:$0xff]
    %v129 = vld [vmem:[#allocation3 + $0x68] sm:$0xff]
    %v130 = vld [vmem:[#allocation3 + $0x70] sm:$0xff]
    %v131 = vld [vmem:[#allocation3 + $0x78] sm:$0xff]
    %v132 = vld [vmem:[%s6] sm:$0x1]
    %v134 = vlaneseq
    %v135 = vshrl.u32 %v134, 7
    %v136 = vsub.s32 0, %v135
    %v137 = vrot.slane %v132, %v136
    %139 = vmatprep.subr.mxu0 0.0
    %140 = vmatpush1.msra.mxu0 %v116
    %141 = vmatprep.subr.mxu0 0.0
    %142 = vmatpush1.msra.mxu0 %v117
    %143 = vmatprep.subr.mxu0 0.0
    %144 = vmatpush1.msra.mxu0 %v118
    %145 = vmatprep.subr.mxu0 0.0
    %146 = vmatpush1.msra.mxu0 %v119
    %147 = vmatprep.subr.mxu0 0.0
    %148 = vmatpush1.msra.mxu0 %v120
    %149 = vmatprep.subr.mxu0 0.0
    %150 = vmatpush1.msra.mxu0 %v121
    %151 = vmatprep.subr.mxu0 0.0
    %152 = vmatpush1.msra.mxu0 %v122
    %153 = vmatprep.subr.mxu0 0.0
    %154 = vmatpush1.msra.mxu0 %v123
    %155 = vmatprep.subr.mxu0 0.0
    %156 = vmatpush1.msra.mxu0 %v124
    %157 = vmatprep.subr.mxu0 0.0
    %158 = vmatpush1.msra.mxu0 %v125
    %159 = vmatprep.subr.mxu0 0.0
    %160 = vmatpush1.msra.mxu0 %v126
    %161 = vmatprep.subr.mxu0 0.0
    %162 = vmatpush1.msra.mxu0 %v127
    %163 = vmatprep.subr.mxu0 0.0
    %164 = vmatpush1.msra.mxu0 %v128
    %165 = vmatprep.subr.mxu0 0.0
    %166 = vmatpush1.msra.mxu0 %v129
    %167 = vmatprep.subr.mxu0 0.0
    %168 = vmatpush1.msra.mxu0 %v130
    %169 = vmatprep.subr.mxu0 0.0
    %170 = vmatpush1.msra.mxu0 %v131
    %171 = vmatprep.subr.mxu0 0.0
    %172 = vmatpush1.msra.mxu0 0.0
    %173 = vmatprep.subr.mxu0 0.0
    %174 = vmatpush1.msra.mxu0 0.0
    %175 = vmatprep.subr.mxu0 0.0
    %176 = vmatpush1.msra.mxu0 0.0
    %177 = vmatprep.subr.mxu0 0.0
    %178 = vmatpush1.msra.mxu0 0.0
    %179 = vmatprep.subr.mxu0 0.0
    %180 = vmatpush1.msra.mxu0 0.0
    %181 = vmatprep.subr.mxu0 0.0
    %182 = vmatpush1.msra.mxu0 0.0
    %183 = vmatprep.subr.mxu0 0.0
    %184 = vmatpush1.msra.mxu0 0.0
    %185 = vmatprep.subr.mxu0 0.0
    %186 = vmatpush1.msra.mxu0 0.0
    %187 = vmatprep.subr.mxu0 0.0
    %188 = vmatpush1.msra.mxu0 0.0
    %189 = vmatprep.subr.mxu0 0.0
    %190 = vmatpush1.msra.mxu0 0.0
    %191 = vmatprep.subr.mxu0 0.0
    %192 = vmatpush1.msra.mxu0 0.0
    %193 = vmatprep.subr.mxu0 0.0
    %194 = vmatpush1.msra.mxu0 0.0
    %195 = vmatprep.subr.mxu0 0.0
    %196 = vmatpush1.msra.mxu0 0.0
    %197 = vmatprep.subr.mxu0 0.0
    %198 = vmatpush1.msra.mxu0 0.0
    %199 = vmatprep.subr.mxu0 0.0
    %200 = vmatpush1.msra.mxu0 0.0
    %201 = vmatprep.subr.mxu0 0.0
    %202 = vmatpush1.msra.mxu0 0.0
    %203 = vmatprep.mubr.f32.mxu0 0.0
    %204 = vmatmul.mubr.f32.gmra.mrb[0].mxu0 %v115
    %v205 = vpop.f32.mrb[0].mxu0
    %v206 = vadd.f32 %v137, %v205
    %v207 = vpop.f32.mrb[0].mxu0
    %208 = vdwg.mxu0
    %v209 = vmul.f32 %v206, 0.2
    %v210 = vmax.f32 %v206, %v209
    %v211 = vld [vmem:[%s7] sm:$0x1]
    %v213 = vlaneseq
    %v214 = vshrl.u32 %v213, 7
    %v215 = vsub.s32 0, %v214
    %v216 = vrot.slane %v211, %v215
    %v218 = vmul.f32 %v210, %v216
    %219 = vadd.xlane.f32.xlu0 %v218
    %v220 = vpop.xlane.xlu0 %219
    %v221 = vld [vmem:[#allocation2] sm:$0x1]
    %v223 = vlaneseq
    %v224 = vshrl.u32 %v223, 7
    %v225 = vsub.s32 0, %v224
    %v226 = vrot.slane %v221, %v225
    %v228 = vadd.f32 %v220, %v226
    %v229 = vmul.f32 %v228, 0.2
    %v230 = vmax.f32 %v228, %v229
    %vm231 = vcmask 7168
    %232 = vst.msk [vmem:[%s9] sm:$0xff] %vm231, %v230
    // Predicated region
    $region42: #{mine_forward.1} parent=1 // pred_check
      _
    $region43: #{mine_forward.1} parent=1 // pred_check_branch
      %234 = sbr.rel (0) target = $region45
    $region44: #{mine_forward.1} parent=1 // pred_region
      _
    $region45: #{mine_forward.1} parent=1 // pred_fallthru
      _
    // Predicated region
    $region46: #{mine_forward.1} parent=1 // pred_check
      _
    $region47: #{mine_forward.1} parent=1 // pred_check_branch
      %236 = sbr.rel (0) target = $region49
    $region48: #{mine_forward.1} parent=1 // pred_region
      _
    $region49: #{mine_forward.1} parent=1 // pred_fallthru
      _
    %237 = vsyncpa [#allocation4], 1

</llo_original>
